<compile_context>
chip_gen: v7x
topology: tpu7x:2x2x1
jax: 0.10.0
libtpu: 0.0.40
codegen_flags: <defaults>
</compile_context>

<pallas_src>
import functools

import jax
import jax.numpy as jnp
from jax.experimental import pallas as pl
from jax.experimental.pallas import tpu as pltpu


def _round_up(x, m):
    return (x + m - 1) // m * m


def _uchida_kernel(w_ref, a_ref, o_ref):
    """One (tm, tn) f32 output tile; grid axis 2 iterates over K tiles."""
    k = pl.program_id(2)

    @pl.when(k == 0)
    def _():
        o_ref[...] = jnp.zeros_like(o_ref)

    o_ref[...] += jnp.dot(
        w_ref[...], a_ref[...], preferred_element_type=jnp.float32
    )

    @pl.when(k == pl.num_programs(2) - 1)
    def _():
        # Fused activation on the final K step; exp goes to the EUP slot.
        o_ref[...] = jax.nn.sigmoid(o_ref[...])


def _vmem_budget_bytes():
    """Scoped-VMEM budget gated on physical VMEM (v7x: 64 MiB -> 32 MiB budget)."""
    try:
        cap = pltpu.get_tpu_info().vmem_capacity_bytes
    except Exception:  # older jax / interpret mode fallback
        cap = 128 * 1024 * 1024
    return min(cap // 2, 64 * 1024 * 1024)


@functools.partial(jax.jit, static_argnames=("tm", "tn", "tk", "compute_dtype"))
def uchida_forward(w, matrix_a, *, tm=None, tn=None, tk=None,
                   compute_dtype=jnp.bfloat16):
    M, K = w.shape
    K2, N = matrix_a.shape
    assert K == K2, "inner dims must match"

    if compute_dtype is None:
        compute_dtype = w.dtype
    compute_dtype = jnp.dtype(compute_dtype)
    in_bytes = compute_dtype.itemsize
    sub_mult = 16 if in_bytes < 4 else 8  # sublane granularity (bf16 packs x2)

    # ---- Tile selection: MXU-friendly, lane-dense output, not full-array ----
    tm = tm if tm is not None else 256
    tn = tn if tn is not None else 512
    tk = tk if tk is not None else 512
    tm = min(_round_up(tm, sub_mult), _round_up(M, sub_mult))
    tn = min(_round_up(tn, 128), _round_up(N, 128))
    tk = min(_round_up(tk, 128), _round_up(K, 128))

    budget = _vmem_budget_bytes()

    def footprint(tm_, tn_, tk_):
        return (2 * tm_ * tk_ * in_bytes      # w tiles (double-buffered)
                + 2 * tk_ * tn_ * in_bytes    # a tiles (double-buffered)
                + 2 * tm_ * tn_ * 4)          # f32 output/accumulator tiles

    # Shrink until the double-buffered working set fits the VMEM budget.
    # Order: K first (pure reduction dim), then M, then output-N last so the
    # output stays lane-dense (unmasked vst) as long as possible.
    while footprint(tm, tn, tk) > budget:
        if tk > 128:
            tk = _round_up(tk // 2, 128)
        elif tm > sub_mult:
            tm = max(sub_mult, _round_up(tm // 2, sub_mult))
        elif tn > 128:
            tn = _round_up(tn // 2, 128)
        else:
            break

    # ---- Inputs: compute-dtype cast; zero-pad only K (ragged K would feed
    #      garbage into valid outputs; ragged M/N are masked by Pallas). ----
    w_c = w.astype(compute_dtype)
    a_c = matrix_a.astype(compute_dtype)
    K_pad = _round_up(K, tk)
    if K_pad != K:
        w_c = jnp.pad(w_c, ((0, 0), (0, K_pad - K)))
        a_c = jnp.pad(a_c, ((0, K_pad - K), (0, 0)))

    grid = (pl.cdiv(M, tm), pl.cdiv(N, tn), K_pad // tk)

    cost = pl.CostEstimate(
        flops=2 * M * N * K,
        transcendentals=M * N,
        bytes_accessed=M * K * in_bytes + K * N * in_bytes + M * N * 4,
    )

    out = pl.pallas_call(
        _uchida_kernel,
        out_shape=jax.ShapeDtypeStruct((M, N), jnp.float32),
        grid_spec=pltpu.PrefetchScalarGridSpec(
            num_scalar_prefetch=0,
            grid=grid,
            in_specs=[
                pl.BlockSpec((tm, tk), lambda i, j, k: (i, k)),  # w tile
                pl.BlockSpec((tk, tn), lambda i, j, k: (k, j)),  # a tile
            ],
            out_specs=pl.BlockSpec((tm, tn), lambda i, j, k: (i, j)),
        ),
        compiler_params=pltpu.CompilerParams(
            dimension_semantics=("parallel", "parallel", "arbitrary"),
            vmem_limit_bytes=budget,
        ),
        cost_estimate=cost,
    )(w_c, a_c)

    # Match the original module's result dtype (f32 params -> f32 output).
    result_dtype = jnp.promote_types(w.dtype, matrix_a.dtype)
    return out.astype(result_dtype)


if __name__ == "__main__":
    # Deterministic parameter + input initialization (synthetic, no checkpoints).
    key = jax.random.PRNGKey(0)
    k_w, k_a = jax.random.split(key)

    M, K, N = 32, 64, 128  # small shapes consistent with w @ matrix_a
    w = jax.random.normal(k_w, (M, K), dtype=jnp.float32) * 0.1
    matrix_a = jax.random.normal(k_a, (K, N), dtype=jnp.float32)

    # Default path: bf16 inputs on the MXU, f32 accumulation + fused sigmoid.
    out = jax.block_until_ready(uchida_forward(w, matrix_a))
    assert out.shape == (M, N) and out.dtype == jnp.float32

    ref_bf16 = jax.nn.sigmoid(
        jnp.dot(w.astype(jnp.bfloat16), matrix_a.astype(jnp.bfloat16),
                preferred_element_type=jnp.float32))
    ref_f32 = jax.nn.sigmoid(w @ matrix_a)
    assert jnp.allclose(out, ref_bf16, atol=2e-3, rtol=2e-3), "bf16-path mismatch"
    assert jnp.allclose(out, ref_f32, atol=3e-2, rtol=3e-2), "bf16-path drift"

    # Full-precision path (compute in f32) matches the f32 reference tightly.
    out_f32 = jax.block_until_ready(
        uchida_forward(w, matrix_a, compute_dtype=jnp.float32))
    assert jnp.allclose(out_f32, ref_f32, atol=1e-5, rtol=1e-5), "f32-path mismatch"

    # Exercise the multi-tile grid + K-axis accumulator path with tiny tiles
    # (forces grid=(2, 1, 4) at these shapes) to validate the pipelined path.
    out_tiled = jax.block_until_ready(
        uchida_forward(w, matrix_a, tm=16, tn=128, tk=16,
                       compute_dtype=jnp.float32))
    assert jnp.allclose(out_tiled, ref_f32, atol=1e-5, rtol=1e-5), \
        "tiled-path mismatch"

    print("KERNEL_OK")
</pallas_src>

<mosaic_0001>
module attributes {stable_mosaic.version = 11 : i64} {
  func.func @_uchida_kernel(%arg0: i32, %arg1: i32, %arg2: i32, %arg3: memref<32x128xbf16, #tpu.memory_space<vmem>>, %arg4: memref<128x128xbf16, #tpu.memory_space<vmem>>, %arg5: memref<32x128xf32, #tpu.memory_space<vmem>>) attributes {dimension_semantics = [#tpu.dimension_semantics<parallel>, #tpu.dimension_semantics<parallel>, #tpu.dimension_semantics<arbitrary>], iteration_bounds = array<i64: 1, 1, 1>, scalar_prefetch = 0 : i64, scratch_operands = 0 : i64, tpu.core_type = #tpu.core_type<tc>, window_params = [{transform_indices = @transform_0, window_bounds = array<i64: 32, 128>}, {transform_indices = @transform_1, window_bounds = array<i64: 128, 128>}, {transform_indices = @transform_2, window_bounds = array<i64: 32, 128>}]} {
    %c0_i32 = arith.constant 0 : i32
    %0 = arith.cmpi eq, %arg2, %c0_i32 : i32
    %1 = arith.extui %0 : i1 to i32
    %c0_i32_0 = arith.constant 0 : i32
    %2 = arith.cmpi ne, %1, %c0_i32_0 : i32
    scf.if %2 {
      %cst_10 = arith.constant 0.000000e+00 : f32
      %12 = vector.broadcast %cst_10 : f32 to vector<32x128xf32>
      %c0_11 = arith.constant 0 : index
      %c0_12 = arith.constant 0 : index
      %13 = vector.load %arg5[%c0_11, %c0_12] : memref<32x128xf32, #tpu.memory_space<vmem>>, vector<32x128xf32>
      tpu.vector_store %arg5[%c0_11, %c0_12], %12 {strides = array<i32>} : memref<32x128xf32, #tpu.memory_space<vmem>>, vector<32x128xf32>,
    } else {
    }
    %c0 = arith.constant 0 : index
    %c0_1 = arith.constant 0 : index
    %3 = vector.load %arg5[%c0, %c0_1] : memref<32x128xf32, #tpu.memory_space<vmem>>, vector<32x128xf32>
    %c0_2 = arith.constant 0 : index
    %c0_3 = arith.constant 0 : index
    %4 = vector.load %arg3[%c0_2, %c0_3] : memref<32x128xbf16, #tpu.memory_space<vmem>>, vector<32x128xbf16>
    %c0_4 = arith.constant 0 : index
    %c0_5 = arith.constant 0 : index
    %5 = vector.load %arg4[%c0_4, %c0_5] : memref<128x128xbf16, #tpu.memory_space<vmem>>, vector<128x128xbf16>
    %cst = arith.constant dense<0.000000e+00> : vector<32x128xf32>
    %6 = tpu.matmul %4, %5, %cst {dimension_numbers = #tpu.dot_dimension_numbers<[1], [0], [0], [1], [0, 0, 1, 1], [], []>} : vector<32x128xbf16>, vector<128x128xbf16>, vector<32x128xf32> -> vector<32x128xf32>
    %7 = arith.addf %3, %6 : vector<32x128xf32>
    %c0_6 = arith.constant 0 : index
    %c0_7 = arith.constant 0 : index
    %8 = vector.load %arg5[%c0_6, %c0_7] : memref<32x128xf32, #tpu.memory_space<vmem>>, vector<32x128xf32>
    tpu.vector_store %arg5[%c0_6, %c0_7], %7 {strides = array<i32>} : memref<32x128xf32, #tpu.memory_space<vmem>>, vector<32x128xf32>,
    %c0_i32_8 = arith.constant 0 : i32
    %9 = arith.cmpi eq, %arg2, %c0_i32_8 : i32
    %10 = arith.extui %9 : i1 to i32
    %c0_i32_9 = arith.constant 0 : i32
    %11 = arith.cmpi ne, %10, %c0_i32_9 : i32
    scf.if %11 {
      %c0_10 = arith.constant 0 : index
      %c0_11 = arith.constant 0 : index
      %12 = vector.load %arg5[%c0_10, %c0_11] : memref<32x128xf32, #tpu.memory_space<vmem>>, vector<32x128xf32>
      %13 = arith.negf %12 : vector<32x128xf32>
      %14 = math.exp %13 : vector<32x128xf32>
      %cst_12 = arith.constant 1.000000e+00 : f32
      %15 = vector.broadcast %cst_12 : f32 to vector<32x128xf32>
      %16 = arith.addf %15, %14 : vector<32x128xf32>
      %17 = arith.divf %15, %16 : vector<32x128xf32>
      %c0_13 = arith.constant 0 : index
      %c0_14 = arith.constant 0 : index
      %18 = vector.load %arg5[%c0_13, %c0_14] : memref<32x128xf32, #tpu.memory_space<vmem>>, vector<32x128xf32>
      tpu.vector_store %arg5[%c0_13, %c0_14], %17 {strides = array<i32>} : memref<32x128xf32, #tpu.memory_space<vmem>>, vector<32x128xf32>,
    } else {
    }
    return
  }
  func.func @transform_0(%arg0: i32, %arg1: i32, %arg2: i32) -> (i32, i32) {
    %c0_i32 = arith.constant 0 : i32
    return %arg0, %arg2 : i32, i32
  }
  func.func @transform_1(%arg0: i32, %arg1: i32, %arg2: i32) -> (i32, i32) {
    %c0_i32 = arith.constant 0 : i32
    return %arg2, %arg1 : i32, i32
  }
  func.func @transform_2(%arg0: i32, %arg1: i32, %arg2: i32) -> (i32, i32) {
    %c0_i32 = arith.constant 0 : i32
    return %arg0, %arg1 : i32, i32
  }
}

</mosaic_0001>

<llo_original>
// kernel: uchida_forward.1
$region0: #{uchida_forward.1}
  #allocation0 [shape = 'u32[]', space=smem, size = 0x4, offset = 0x4, fixed_abs, tag = 'smem constant byte address 0x4 - core index']
  #allocation1 [shape = 'u32[144,128]{1,0:T(1,128)}', space=vmem, size = 0x12000, scoped, tag = 'internal scratch']
  %s0 = inlined_call_operand.hbm [shape: bf16[32,128], index: 0, kind: input, shape index: {}]
  %s1 = inlined_call_operand.hbm [shape: bf16[128,128], index: 1, kind: input, shape index: {}]
  %s2 = inlined_call_operand.hbm [shape: f32[32,128], index: 2, kind: output, shape index: {}]
  %s3 = sld [smem:[#allocation0]]
  $region34: #{uchida_forward.1} parent=0
    _
  %s5 = ssub.s32 1, %s3
  %s6 = scalar_select 0, %s5, %s3
  $region1: #{uchida_forward.1} parent=0
    #allocation2 [shape = 'u8[8192]{0}', space=vmem, size = 0x2000, scoped, tag = 'input window, operand 0, single buffered']
    #allocation3 [shape = 's32[1]{0}', space=sflag, size = 0x4, scoped, tag = 'scoped memory for uchida_forward.1']
    #allocation4 [shape = 's32[1]{0}', space=sflag, size = 0x4, scoped, tag = 'scoped memory for uchida_forward.1']
    #allocation5 [shape = 'u8[32768]{0}', space=vmem, size = 0x8000, scoped, tag = 'input window, operand 1, single buffered']
    #allocation6 [shape = 's32[1]{0}', space=sflag, size = 0x4, scoped, tag = 'scoped memory for uchida_forward.1']
    #allocation7 [shape = 'u8[16384]{0}', space=vmem, size = 0x4000, scoped, tag = 'output window, operand 0, single buffered']
    %7 = vsyncpa [#allocation3], 0
    %8 = vsyncpa [#allocation6], 0
    %9 = vsyncpa [#allocation4], 0
    // Predicated region
    $region2: #{uchida_forward.1} parent=1 // pred_check
      _
    $region3: #{uchida_forward.1} parent=1 // pred_check_branch
      %11 = sbr.rel (0) target = $region5
    $region4: #{uchida_forward.1} parent=1 // pred_region
      %s13 = ssub.s32 256, 256
      %14 = vsyncadd [#allocation3], %s13
      %s15 = sshll.u32 [#allocation2], 4
      %s16 = int_to_ptr.vmem [resolvable:$true] %s15
      %21 = dma.hbm_to_vmem [thread:$0]  %s0, 256, %s16, [#allocation3], 64, 64, 4
    $region5: #{uchida_forward.1} parent=1 // pred_fallthru
      _
    // Predicated region
    $region6: #{uchida_forward.1} parent=1 // pred_check
      _
    $region7: #{uchida_forward.1} parent=1 // pred_check_branch
      %23 = sbr.rel (0) target = $region9
    $region8: #{uchida_forward.1} parent=1 // pred_region
      %s25 = ssub.s32 1024, 1024
      %26 = vsyncadd [#allocation6], %s25
      %s27 = sshll.u32 [#allocation5], 4
      %s28 = int_to_ptr.vmem [resolvable:$true] %s27
      %33 = dma.hbm_to_vmem [thread:$0]  %s1, 1024, %s28, [#allocation6], 64, 64, 4
    $region9: #{uchida_forward.1} parent=1 // pred_fallthru
      _
    // Predicated region
    $region10: #{uchida_forward.1} parent=1 // pred_check
      _
    $region11: #{uchida_forward.1} parent=1 // pred_check_branch
      %35 = sbr.rel (0) target = $region13
    $region12: #{uchida_forward.1} parent=1 // pred_region
      %36 = dma.done [#allocation3], 256
    $region13: #{uchida_forward.1} parent=1 // pred_fallthru
      _
    // Predicated region
    $region14: #{uchida_forward.1} parent=1 // pred_check
      _
    $region15: #{uchida_forward.1} parent=1 // pred_check_branch
      %38 = sbr.rel (0) target = $region17
    $region16: #{uchida_forward.1} parent=1 // pred_region
      %39 = dma.done [#allocation6], 1024
    $region17: #{uchida_forward.1} parent=1 // pred_fallthru
      _
    %p41 = scmp.eq.s32.totalorder 0, 0
    // Predicated region
    $region18: #{uchida_forward.1} parent=1 // pred_check
      %p42 = pneg %p41
    $region19: #{uchida_forward.1} parent=1 // pred_check_branch
      %44 = sbr.rel (%p42) target = $region21
    $region20: #{uchida_forward.1} parent=1 // pred_region
      %45 = vst [vmem:[#allocation7] sm:$0xff] 0.0
      %46 = vst [vmem:[#allocation7 + $0x8] sm:$0xff] 0.0
      %47 = vst [vmem:[#allocation7 + $0x10] sm:$0xff] 0.0
      %48 = vst [vmem:[#allocation7 + $0x18] sm:$0xff] 0.0
    $region21: #{uchida_forward.1} parent=1 // pred_fallthru
      _
    %v49 = vld [vmem:[#allocation7] sm:$0xff]
    %v50 = vld [vmem:[#allocation7 + $0x8] sm:$0xff]
    %v51 = vld [vmem:[#allocation7 + $0x10] sm:$0xff]
    %v52 = vld [vmem:[#allocation7 + $0x18] sm:$0xff]
    %v53 = vld [vmem:[#allocation2] sm:$0xf]
    %v54 = vld [vmem:[#allocation2 + $0x4] sm:$0xf]
    %v55 = vld [vmem:[#allocation2 + $0x8] sm:$0xf]
    %v56 = vld [vmem:[#allocation2 + $0xc] sm:$0xf]
    %v57 = vld [vmem:[#allocation5] sm:$0xf]
    %v58 = vld [vmem:[#allocation5 + $0x4] sm:$0xf]
    %v59 = vld [vmem:[#allocation5 + $0x8] sm:$0xf]
    %v60 = vld [vmem:[#allocation5 + $0xc] sm:$0xf]
    %v61 = vld [vmem:[#allocation5 + $0x10] sm:$0xf]
    %v62 = vld [vmem:[#allocation5 + $0x14] sm:$0xf]
    %v63 = vld [vmem:[#allocation5 + $0x18] sm:$0xf]
    %v64 = vld [vmem:[#allocation5 + $0x1c] sm:$0xf]
    %v65 = vld [vmem:[#allocation5 + $0x20] sm:$0xf]
    %v66 = vld [vmem:[#allocation5 + $0x24] sm:$0xf]
    %v67 = vld [vmem:[#allocation5 + $0x28] sm:$0xf]
    %v68 = vld [vmem:[#allocation5 + $0x2c] sm:$0xf]
    %v69 = vld [vmem:[#allocation5 + $0x30] sm:$0xf]
    %v70 = vld [vmem:[#allocation5 + $0x34] sm:$0xf]
    %v71 = vld [vmem:[#allocation5 + $0x38] sm:$0xf]
    %v72 = vld [vmem:[#allocation5 + $0x3c] sm:$0xf]
    %v77 = vunpack.c.l.b16 %v53
    %v78 = vunpack.c.l.b16 %v54
    %v79 = vunpack.c.l.b16 %v55
    %v80 = vunpack.c.l.b16 %v56
    %v81 = vpack.c.b16 %v78, %v77
    %v82 = vpack.c.b16 %v80, %v79
    %v101 = vunpack.c.l.b16 %v57
    %v102 = vunpack.c.l.b16 %v58
    %v103 = vunpack.c.l.b16 %v59
    %v104 = vunpack.c.l.b16 %v60
    %v105 = vunpack.c.l.b16 %v61
    %v106 = vunpack.c.l.b16 %v62
    %v107 = vunpack.c.l.b16 %v63
    %v108 = vunpack.c.l.b16 %v64
    %v109 = vunpack.c.l.b16 %v65
    %v110 = vunpack.c.l.b16 %v66
    %v111 = vunpack.c.l.b16 %v67
    %v112 = vunpack.c.l.b16 %v68
    %v113 = vunpack.c.l.b16 %v69
    %v114 = vunpack.c.l.b16 %v70
    %v115 = vunpack.c.l.b16 %v71
    %v116 = vunpack.c.l.b16 %v72
    %v117 = vpack.c.b16 %v102, %v101
    %v118 = vpack.c.b16 %v104, %v103
    %v119 = vpack.c.b16 %v106, %v105
    %v120 = vpack.c.b16 %v108, %v107
    %v121 = vpack.c.b16 %v110, %v109
    %v122 = vpack.c.b16 %v112, %v111
    %v123 = vpack.c.b16 %v114, %v113
    %v124 = vpack.c.b16 %v116, %v115
    %133 = vmatprep.subr.bf16.mxu0 0
    %134 = vmatpush1.bf16.msra.mxu0 %v117
    %135 = vmatprep.subr.bf16.mxu0 0
    %136 = vmatpush1.bf16.msra.mxu0 %v118
    %137 = vmatprep.subr.bf16.mxu0 0
    %138 = vmatpush1.bf16.msra.mxu0 %v119
    %139 = vmatprep.subr.bf16.mxu0 0
    %140 = vmatpush1.bf16.msra.mxu0 %v120
    %141 = vmatprep.subr.bf16.mxu0 0
    %142 = vmatpush1.bf16.msra.mxu0 %v121
    %143 = vmatprep.subr.bf16.mxu0 0
    %144 = vmatpush1.bf16.msra.mxu0 %v122
    %145 = vmatprep.subr.bf16.mxu0 0
    %146 = vmatpush1.bf16.msra.mxu0 %v123
    %147 = vmatprep.subr.bf16.mxu0 0
    %148 = vmatpush1.bf16.msra.mxu0 %v124
    %149 = vmatprep.subr.bf16.mxu0 0
    %150 = vmatpush1.bf16.msra.mxu0 0
    %151 = vmatprep.subr.bf16.mxu0 0
    %152 = vmatpush1.bf16.msra.mxu0 0
    %153 = vmatprep.subr.bf16.mxu0 0
    %154 = vmatpush1.bf16.msra.mxu0 0
    %155 = vmatprep.subr.bf16.mxu0 0
    %156 = vmatpush1.bf16.msra.mxu0 0
    %157 = vmatprep.subr.bf16.mxu0 0
    %158 = vmatpush1.bf16.msra.mxu0 0
    %159 = vmatprep.subr.bf16.mxu0 0
    %160 = vmatpush1.bf16.msra.mxu0 0
    %161 = vmatprep.subr.bf16.mxu0 0
    %162 = vmatpush1.bf16.msra.mxu0 0
    %163 = vmatprep.subr.bf16.mxu0 0
    %164 = vmatpush1.bf16.msra.mxu0 0
    %165 = vmatprep.mubr.bf16.mxu0 0
    %166 = vmatmul.mubr.bf16.gmra.mrb[0].mxu0 %v81
    %v167 = vpop.f32.mrb[0].mxu0
    %v168 = vadd.f32 0.0, %v167
    %v169 = vpop.f32.mrb[0].mxu0
    %v170 = vpop.f32.mrb[0].mxu0
    %v171 = vadd.f32 0.0, %v170
    %v172 = vpop.f32.mrb[0].mxu0
    %173 = vmatprep.mubr.bf16.mxu0 0
    %174 = vmatmul.mubr.bf16.gmra.mrb[0].mxu0 %v82
    %v175 = vpop.f32.mrb[0].mxu0
    %v176 = vadd.f32 0.0, %v175
    %v177 = vpop.f32.mrb[0].mxu0
    %v178 = vpop.f32.mrb[0].mxu0
    %v179 = vadd.f32 0.0, %v178
    %v180 = vpop.f32.mrb[0].mxu0
    %181 = vdwg.mxu0
    %v182 = vadd.f32 %v49, %v168
    %v183 = vadd.f32 %v50, %v171
    %v184 = vadd.f32 %v51, %v176
    %v185 = vadd.f32 %v52, %v179
    %186 = vst [vmem:[#allocation7] sm:$0xff] %v182
    %187 = vst [vmem:[#allocation7 + $0x8] sm:$0xff] %v183
    %188 = vst [vmem:[#allocation7 + $0x10] sm:$0xff] %v184
    %189 = vst [vmem:[#allocation7 + $0x18] sm:$0xff] %v185
    // Predicated region
    $region22: #{uchida_forward.1} parent=1 // pred_check
      %p190 = pneg %p41
    $region23: #{uchida_forward.1} parent=1 // pred_check_branch
      %192 = sbr.rel (%p190) target = $region25
    $region24: #{uchida_forward.1} parent=1 // pred_region
      %v193 = vld [vmem:[#allocation7] sm:$0xff]
      %v194 = vld [vmem:[#allocation7 + $0x8] sm:$0xff]
      %v195 = vld [vmem:[#allocation7 + $0x10] sm:$0xff]
      %v196 = vld [vmem:[#allocation7 + $0x18] sm:$0xff]
      %v197 = vxor.u32 %v193, 2147483648
      %v198 = vxor.u32 %v194, 2147483648
      %v199 = vxor.u32 %v195, 2147483648
      %v200 = vxor.u32 %v196, 2147483648
      %v201 = vmul.f32 %v197, 1.442695
      %v202 = vpow.pop %v201
      %v203 = vmul.f32 %v198, 1.442695
      %v204 = vpow.pop %v203
      %v205 = vmul.f32 %v199, 1.442695
      %v206 = vpow.pop %v205
      %v207 = vmul.f32 %v200, 1.442695
      %v208 = vpow.pop %v207
      %v209 = vadd.f32 %v202, 1.0
      %v210 = vadd.f32 %v204, 1.0
      %v211 = vadd.f32 %v206, 1.0
      %v212 = vadd.f32 %v208, 1.0
      %v213 = vrcp.pop %v209
      %v214 = vmul.f32 1.0, %v213
      %v215 = vrcp.pop %v210
      %v216 = vmul.f32 1.0, %v215
      %v217 = vrcp.pop %v211
      %v218 = vmul.f32 1.0, %v217
      %v219 = vrcp.pop %v212
      %v220 = vmul.f32 1.0, %v219
      %221 = vst [vmem:[#allocation7] sm:$0xff] %v214
      %222 = vst [vmem:[#allocation7 + $0x8] sm:$0xff] %v216
      %223 = vst [vmem:[#allocation7 + $0x10] sm:$0xff] %v218
      %224 = vst [vmem:[#allocation7 + $0x18] sm:$0xff] %v220
    $region25: #{uchida_forward.1} parent=1 // pred_fallthru
      _
    // Predicated region
    $region26: #{uchida_forward.1} parent=1 // pred_check
      _
    $region27: #{uchida_forward.1} parent=1 // pred_check_branch
      %226 = sbr.rel (0) target = $region29
    $region28: #{uchida_forward.1} parent=1 // pred_region
      %s228 = ssub.s32 512, 512
      %229 = vsyncadd [#allocation4], %s228
      %s230 = sshll.u32 [#allocation7], 4
      %s231 = int_to_ptr.vmem [resolvable:$true] %s230
      %236 = dma.vmem_to_hbm [thread:$0]  %s231, 512, %s2, [#allocation4], 128, 128, 8
    $region29: #{uchida_forward.1} parent=1 // pred_fallthru
      _
    // Predicated region
    $region30: #{uchida_forward.1} parent=1 // pred_check
      _
    $region31: #{uchida_forward.1} parent=1 // pred_check_branch
      %238 = sbr.rel (0) target = $region33
    $region32: #{uchida_forward.1} parent=1 // pred_region
      %239 = dma.done [#allocation4], 512
    $region33: #{uchida_forward.1} parent=1 // pred_fallthru
      _
    %240 = vsyncpa [#allocation3], 1
    %241 = vsyncpa [#allocation6], 1
    %242 = vsyncpa [#allocation4], 1

</llo_original>
